<compile_context>
chip_gen: v5e
topology: v5e:2x2
jax: 0.10.0
libtpu: 0.0.40
codegen_flags: <defaults>
</compile_context>

<pallas_src>
import jax
import jax.numpy as jnp
from jax import lax
from jax.experimental import pallas as pl
from jax.experimental.pallas import tpu as pltpu


def _round_up(x, m):
    return (x + m - 1) // m * m


def cls_mlp_kernel(x_ref, w1_ref, b1_ref, w2_ref, b2_ref, o_ref):
    # fc1: x (tm, d) contracted with W1 (out, in) on both arrays' last axis
    # (MXU handles the transposed-RHS contraction natively, no transpose op).
    h = lax.dot_general(
        x_ref[...], w1_ref[...],
        dimension_numbers=(((1,), (1,)), ((), ())),
        preferred_element_type=jnp.float32)
    h = jnp.maximum(h + b1_ref[...], 0.0)            # bias + ReLU in f32 (VPU)
    # dropout: identity in eval mode.
    # TODO(synk): train-mode dropout mask (pltpu.prng_*) not matched to torch RNG.
    # fc2 on the lane-padded output width (out_pad is a multiple of 128).
    y = lax.dot_general(
        h.astype(w2_ref.dtype), w2_ref[...],
        dimension_numbers=(((1,), (1,)), ((), ())),
        preferred_element_type=jnp.float32)
    o_ref[...] = (y + b2_ref[...]).astype(o_ref.dtype)


def _vmem_bytes(tm, d_model, out_pad, in_bytes, out_bytes):
    # double-buffered pipelined x / out tiles + resident weights + f32 temps
    x_bufs = 2 * tm * d_model * in_bytes
    o_bufs = 2 * tm * out_pad * out_bytes
    w1_bufs = 2 * d_model * d_model * in_bytes
    w2_bufs = 2 * out_pad * d_model * in_bytes
    b_bufs = 2 * (d_model + out_pad) * 4
    tmp = tm * d_model * 4 + tm * out_pad * 4        # h (f32), y (f32)
    return x_bufs + o_bufs + w1_bufs + w2_bufs + b_bufs + tmp


def cls_mlp_forward(x, w1, b1, w2, b2, *, tm=1024, use_bf16=True):
    """x: (batch, seq, d_model).  w1: (d_model, d_model), w2: (out_fea, d_model)
    in PyTorch nn.Linear (out, in) layout.  Returns (batch, seq, out_fea)."""
    batch, seq, d_model = x.shape
    out_fea = w2.shape[0]
    out_dtype = x.dtype
    n = batch * seq

    # Lane-dense output width (multiple of 128) -> unmasked full-vreg stores.
    out_pad = _round_up(out_fea, 128)

    # Row tile: as large as possible, sublane-aligned, no bigger than needed.
    tm = min(tm, _round_up(n, 8))
    tm = _round_up(tm, 8)
    mxu_dtype = jnp.bfloat16 if use_bf16 else x.dtype
    in_bytes = jnp.dtype(mxu_dtype).itemsize
    out_bytes = jnp.dtype(out_dtype).itemsize
    # Keep the footprint comfortably inside v7x's 64 MiB/TC VMEM.
    budget = 40 * 1024 * 1024
    while tm > 64 and _vmem_bytes(tm, d_model, out_pad, in_bytes, out_bytes) > budget:
        tm = max(64, tm // 2)
    # TODO(synk): for very large d_model (resident weights >= ~16 MiB) add a
    # K grid axis + f32 VMEM accumulator instead of holding full W1/W2 resident.

    n_pad = _round_up(n, tm)
    grid = (n_pad // tm,)

    # Flatten rows; zero-pad the tail tile (padded rows are discarded below).
    x2 = x.reshape(n, d_model)
    if n_pad != n:
        x2 = jnp.pad(x2, ((0, n_pad - n), (0, 0)))
    x2 = x2.astype(mxu_dtype)

    # Weights stay in PyTorch (out, in) layout (no per-call transpose);
    # pad fc2's output rows up to the lane-dense width with zeros.
    w1c = w1.astype(mxu_dtype)
    w2p = jnp.pad(w2, ((0, out_pad - out_fea), (0, 0))) if out_pad != out_fea else w2
    w2c = w2p.astype(mxu_dtype)
    b1r = b1.reshape(1, d_model).astype(jnp.float32)
    b2p = jnp.pad(b2, (0, out_pad - out_fea)) if out_pad != out_fea else b2
    b2r = b2p.reshape(1, out_pad).astype(jnp.float32)

    est = _vmem_bytes(tm, d_model, out_pad, in_bytes, out_bytes)
    vmem_limit = int(min(64 * 1024 * 1024, max(32 * 1024 * 1024, 2 * est)))

    out = pl.pallas_call(
        cls_mlp_kernel,
        out_shape=jax.ShapeDtypeStruct((n_pad, out_pad), out_dtype),
        grid_spec=pltpu.PrefetchScalarGridSpec(
            num_scalar_prefetch=0,
            grid=grid,
            in_specs=[
                pl.BlockSpec((tm, d_model), lambda i: (i, 0)),        # x row tile
                pl.BlockSpec((d_model, d_model), lambda i: (0, 0)),   # W1 (out,in)
                pl.BlockSpec((1, d_model), lambda i: (0, 0)),         # b1
                pl.BlockSpec((out_pad, d_model), lambda i: (0, 0)),   # W2 padded
                pl.BlockSpec((1, out_pad), lambda i: (0, 0)),         # b2 padded
            ],
            out_specs=pl.BlockSpec((tm, out_pad), lambda i: (i, 0)),
        ),
        compiler_params=pltpu.CompilerParams(
            dimension_semantics=("parallel",),   # row axis shards across TCs (v7x)
            vmem_limit_bytes=vmem_limit,
        ),
    )(x2, w1c, b1r, w2c, b2r)

    return out[:n, :out_fea].reshape(batch, seq, out_fea)


def reference_forward(x, w1, b1, w2, b2):
    h = jnp.maximum(jnp.einsum("bsd,ed->bse", x, w1) + b1, 0.0)
    return jnp.einsum("bsd,od->bso", h, w2) + b2


if __name__ == "__main__":
    # small shapes consistent with the module (d_model scaled down)
    batch, seq, d_model, out_fea = 2, 8, 32, 1

    key = jax.random.PRNGKey(0)
    kx, kw1, kb1, kw2, kb2 = jax.random.split(key, 5)

    x = jax.random.normal(kx, (batch, seq, d_model), dtype=jnp.float32)
    # PyTorch nn.Linear parameter layout: weight (out, in), bias (out,)
    w1 = jax.random.normal(kw1, (d_model, d_model), dtype=jnp.float32) * 0.05
    b1 = jax.random.normal(kb1, (d_model,), dtype=jnp.float32) * 0.05
    w2 = jax.random.normal(kw2, (out_fea, d_model), dtype=jnp.float32) * 0.05
    b2 = jax.random.normal(kb2, (out_fea,), dtype=jnp.float32) * 0.05

    y = cls_mlp_forward(x, w1, b1, w2, b2)
    y = jax.block_until_ready(y)

    y_ref = reference_forward(x, w1, b1, w2, b2)
    assert y.shape == (batch, seq, out_fea)
    # bf16 MXU operands with f32 accumulation: relaxed tolerance vs f32 reference.
    assert jnp.allclose(y, y_ref, atol=2e-2, rtol=2e-2), float(
        jnp.max(jnp.abs(y - y_ref)))

    print("KERNEL_OK")
</pallas_src>

<mosaic_0001>
module attributes {stable_mosaic.version = 11 : i64} {
  func.func @cls_mlp_kernel(%arg0: i32, %arg1: memref<16x32xbf16, #tpu.memory_space<vmem>>, %arg2: memref<32x32xbf16, #tpu.memory_space<vmem>>, %arg3: memref<1x32xf32, #tpu.memory_space<vmem>>, %arg4: memref<128x32xbf16, #tpu.memory_space<vmem>>, %arg5: memref<1x128xf32, #tpu.memory_space<vmem>>, %arg6: memref<16x128xf32, #tpu.memory_space<vmem>>) attributes {dimension_semantics = [#tpu.dimension_semantics<parallel>], iteration_bounds = array<i64: 1>, scalar_prefetch = 0 : i64, scratch_operands = 0 : i64, tpu.core_type = #tpu.core_type<tc>, window_params = [{transform_indices = @transform_0, window_bounds = array<i64: 16, 32>}, {pipeline_mode = #tpu.pipeline_mode<synchronous>, transform_indices = @transform_1, window_bounds = array<i64: 32, 32>}, {pipeline_mode = #tpu.pipeline_mode<synchronous>, transform_indices = @transform_2, window_bounds = array<i64: 1, 32>}, {pipeline_mode = #tpu.pipeline_mode<synchronous>, transform_indices = @transform_3, window_bounds = array<i64: 128, 32>}, {pipeline_mode = #tpu.pipeline_mode<synchronous>, transform_indices = @transform_4, window_bounds = array<i64: 1, 128>}, {transform_indices = @transform_5, window_bounds = array<i64: 16, 128>}]} {
    %c0 = arith.constant 0 : index
    %c0_0 = arith.constant 0 : index
    %0 = vector.load %arg1[%c0, %c0_0] : memref<16x32xbf16, #tpu.memory_space<vmem>>, vector<16x32xbf16>
    %c0_1 = arith.constant 0 : index
    %c0_2 = arith.constant 0 : index
    %1 = vector.load %arg2[%c0_1, %c0_2] : memref<32x32xbf16, #tpu.memory_space<vmem>>, vector<32x32xbf16>
    %cst = arith.constant dense<0.000000e+00> : vector<16x32xf32>
    %2 = tpu.matmul %0, %1, %cst {dimension_numbers = #tpu.dot_dimension_numbers<[1], [1], [0], [0], [0, 0, 1, 0], [], []>} : vector<16x32xbf16>, vector<32x32xbf16>, vector<16x32xf32> -> vector<16x32xf32>
    %c0_3 = arith.constant 0 : index
    %c0_4 = arith.constant 0 : index
    %3 = vector.load %arg3[%c0_3, %c0_4] : memref<1x32xf32, #tpu.memory_space<vmem>>, vector<1x32xf32>
    %4 = vector.broadcast %3 : vector<1x32xf32> to vector<16x32xf32>
    %5 = arith.addf %2, %4 : vector<16x32xf32>
    %cst_5 = arith.constant 0.000000e+00 : f32
    %6 = vector.broadcast %cst_5 : f32 to vector<16x32xf32>
    %7 = arith.maximumf %5, %6 : vector<16x32xf32>
    %8 = arith.truncf %7 : vector<16x32xf32> to vector<16x32xbf16>
    %c0_6 = arith.constant 0 : index
    %c0_7 = arith.constant 0 : index
    %9 = vector.load %arg4[%c0_6, %c0_7] : memref<128x32xbf16, #tpu.memory_space<vmem>>, vector<128x32xbf16>
    %cst_8 = arith.constant dense<0.000000e+00> : vector<16x128xf32>
    %10 = tpu.matmul %8, %9, %cst_8 {dimension_numbers = #tpu.dot_dimension_numbers<[1], [1], [0], [0], [0, 0, 1, 0], [], []>} : vector<16x32xbf16>, vector<128x32xbf16>, vector<16x128xf32> -> vector<16x128xf32>
    %c0_9 = arith.constant 0 : index
    %c0_10 = arith.constant 0 : index
    %11 = vector.load %arg5[%c0_9, %c0_10] : memref<1x128xf32, #tpu.memory_space<vmem>>, vector<1x128xf32>
    %12 = vector.broadcast %11 : vector<1x128xf32> to vector<16x128xf32>
    %13 = arith.addf %10, %12 : vector<16x128xf32>
    %c0_11 = arith.constant 0 : index
    %c0_12 = arith.constant 0 : index
    %14 = vector.load %arg6[%c0_11, %c0_12] : memref<16x128xf32, #tpu.memory_space<vmem>>, vector<16x128xf32>
    tpu.vector_store %arg6[%c0_11, %c0_12], %13 {strides = array<i32>} : memref<16x128xf32, #tpu.memory_space<vmem>>, vector<16x128xf32>,
    return
  }
  func.func @transform_0(%arg0: i32) -> (i32, i32) {
    %c0_i32 = arith.constant 0 : i32
    %c0_i32_0 = arith.constant 0 : i32
    return %arg0, %c0_i32 : i32, i32
  }
  func.func @transform_1(%arg0: i32) -> (i32, i32) {
    %c0_i32 = arith.constant 0 : i32
    %c0_i32_0 = arith.constant 0 : i32
    %c0_i32_1 = arith.constant 0 : i32
    return %c0_i32, %c0_i32_0 : i32, i32
  }
  func.func @transform_2(%arg0: i32) -> (i32, i32) {
    %c0_i32 = arith.constant 0 : i32
    %c0_i32_0 = arith.constant 0 : i32
    %c0_i32_1 = arith.constant 0 : i32
    return %c0_i32, %c0_i32_0 : i32, i32
  }
  func.func @transform_3(%arg0: i32) -> (i32, i32) {
    %c0_i32 = arith.constant 0 : i32
    %c0_i32_0 = arith.constant 0 : i32
    %c0_i32_1 = arith.constant 0 : i32
    return %c0_i32, %c0_i32_0 : i32, i32
  }
  func.func @transform_4(%arg0: i32) -> (i32, i32) {
    %c0_i32 = arith.constant 0 : i32
    %c0_i32_0 = arith.constant 0 : i32
    %c0_i32_1 = arith.constant 0 : i32
    return %c0_i32, %c0_i32_0 : i32, i32
  }
  func.func @transform_5(%arg0: i32) -> (i32, i32) {
    %c0_i32 = arith.constant 0 : i32
    %c0_i32_0 = arith.constant 0 : i32
    return %arg0, %c0_i32 : i32, i32
  }
}

</mosaic_0001>

<llo_original>
// kernel: tpu_custom_call.1
$region0: #{tpu_custom_call.1}
  #allocation0 [shape = 'u32[]', space=smem, size = 0x4, offset = 0x4, fixed_abs, tag = 'smem constant byte address 0x4 - core index']
  #allocation1 [shape = 'u32[72,128]{1,0:T(1,128)}', space=vmem, size = 0x9000, scoped, tag = 'internal scratch']
  %s0 = inlined_call_operand.vmem [shape: bf16[16,32], index: 0, kind: input, shape index: {}]
  %s1 = inlined_call_operand.vmem [shape: bf16[32,32], index: 1, kind: input, shape index: {}]
  %s2 = inlined_call_operand.vmem [shape: f32[1,32], index: 2, kind: input, shape index: {}]
  %s3 = inlined_call_operand.vmem [shape: bf16[128,32], index: 3, kind: input, shape index: {}]
  %s4 = inlined_call_operand.vmem [shape: f32[1,128], index: 4, kind: input, shape index: {}]
  %s5 = inlined_call_operand.hbm [shape: f32[16,128], index: 5, kind: output, shape index: {}]
  %s6 = sld [smem:[#allocation0]]
  $region30: #{tpu_custom_call.1} parent=0
    _
  %s8 = ssub.s32 1, %s6
  %s9 = scalar_select 0, %s8, %s6
  $region1: #{tpu_custom_call.1} parent=0
    #allocation2 [shape = 'u8[8192]{0}', space=vmem, size = 0x2000, scoped, tag = 'output window, operand 0, single buffered']
    #allocation3 [shape = 's32[1]{0}', space=sflag, size = 0x4, scoped, tag = 'scoped memory for tpu_custom_call.1']
    %10 = vsyncpa [#allocation3], 0
    // Predicated region
    $region2: #{tpu_custom_call.1} parent=1 // pred_check
      _
    $region3: #{tpu_custom_call.1} parent=1 // pred_check_branch
      %12 = sbr.rel (0) target = $region5
    $region4: #{tpu_custom_call.1} parent=1 // pred_region
      _
    $region5: #{tpu_custom_call.1} parent=1 // pred_fallthru
      _
    // Predicated region
    $region6: #{tpu_custom_call.1} parent=1 // pred_check
      _
    $region7: #{tpu_custom_call.1} parent=1 // pred_check_branch
      %14 = sbr.rel (0) target = $region9
    $region8: #{tpu_custom_call.1} parent=1 // pred_region
      _
    $region9: #{tpu_custom_call.1} parent=1 // pred_fallthru
      _
    // Predicated region
    $region10: #{tpu_custom_call.1} parent=1 // pred_check
      _
    $region11: #{tpu_custom_call.1} parent=1 // pred_check_branch
      %16 = sbr.rel (0) target = $region13
    $region12: #{tpu_custom_call.1} parent=1 // pred_region
      _
    $region13: #{tpu_custom_call.1} parent=1 // pred_fallthru
      _
    // Predicated region
    $region14: #{tpu_custom_call.1} parent=1 // pred_check
      _
    $region15: #{tpu_custom_call.1} parent=1 // pred_check_branch
      %18 = sbr.rel (0) target = $region17
    $region16: #{tpu_custom_call.1} parent=1 // pred_region
      _
    $region17: #{tpu_custom_call.1} parent=1 // pred_fallthru
      _
    // Predicated region
    $region18: #{tpu_custom_call.1} parent=1 // pred_check
      _
    $region19: #{tpu_custom_call.1} parent=1 // pred_check_branch
      %20 = sbr.rel (0) target = $region21
    $region20: #{tpu_custom_call.1} parent=1 // pred_region
      _
    $region21: #{tpu_custom_call.1} parent=1 // pred_fallthru
      _
    %v22 = vld [vmem:[%s0] sm:$0xf]
    %v23 = vld [vmem:[%s0 + $0x4] sm:$0xf]
    %v24 = vld [vmem:[%s1] sm:$0xf]
    %v25 = vld [vmem:[%s1 + $0x4] sm:$0xf]
    %v26 = vld [vmem:[%s1 + $0x8] sm:$0xf]
    %v27 = vld [vmem:[%s1 + $0xc] sm:$0xf]
    %v28 = vld [vmem:[%s2] sm:$0x1]
    %v30 = vperm.slane %v28, 0
    %v34 = vunpack.c.l.b16 %v22
    %v35 = vunpack.c.l.b16 %v23
    %v36 = vpack.c.b16 %v35, %v34
    %v41 = vunpack.c.l.b16 %v24
    %v42 = vunpack.c.l.b16 %v25
    %v43 = vunpack.c.l.b16 %v26
    %v44 = vunpack.c.l.b16 %v27
    %v45 = vpack.c.b16 %v42, %v41
    %v46 = vpack.c.b16 %v44, %v43
    %vm47 = vcmask 261120
    %v49 = vsel %vm47, %v36, 0
    %v52 = vsel %vm47, %v45, 0
    %v55 = vsel %vm47, %v46, 0
    %57 = vmatpush.bf16.xpose.msra.mxu0 0
    %58 = vmatpush.bf16.xpose.msra.mxu0 0
    %59 = vmatpush.bf16.xpose.msra.mxu0 0
    %60 = vmatpush.bf16.xpose.msra.mxu0 0
    %61 = vmatpush.bf16.xpose.msra.mxu0 0
    %62 = vmatpush.bf16.xpose.msra.mxu0 0
    %63 = vmatpush.bf16.xpose.msra.mxu0 %v55
    %64 = vmatpush.bf16.xpose.msra.mxu0 %v52
    %65 = vmatmul.bf16.gmra.mxu0 %v49
    %v66 = vpop.f32.mrf.mxu0
    %v67 = vadd.f32 %v30, %v66
    %v68 = vpop.f32.mrf.mxu0
    %v69 = vadd.f32 %v30, %v68
    %70 = vdwg.mxu0
    %v71 = vmax.f32 %v67, 0.0
    %v72 = vmax.f32 %v69, 0.0
    %v73 = vpack.c.bf16 %v72, %v71
    %v74 = vld [vmem:[%s3] sm:$0xf]
    %v75 = vld [vmem:[%s3 + $0x4] sm:$0xf]
    %v76 = vld [vmem:[%s3 + $0x8] sm:$0xf]
    %v77 = vld [vmem:[%s3 + $0xc] sm:$0xf]
    %v78 = vld [vmem:[%s3 + $0x10] sm:$0xf]
    %v79 = vld [vmem:[%s3 + $0x14] sm:$0xf]
    %v80 = vld [vmem:[%s3 + $0x18] sm:$0xf]
    %v81 = vld [vmem:[%s3 + $0x1c] sm:$0xf]
    %v82 = vld [vmem:[%s3 + $0x20] sm:$0xf]
    %v83 = vld [vmem:[%s3 + $0x24] sm:$0xf]
    %v84 = vld [vmem:[%s3 + $0x28] sm:$0xf]
    %v85 = vld [vmem:[%s3 + $0x2c] sm:$0xf]
    %v86 = vld [vmem:[%s3 + $0x30] sm:$0xf]
    %v87 = vld [vmem:[%s3 + $0x34] sm:$0xf]
    %v88 = vld [vmem:[%s3 + $0x38] sm:$0xf]
    %v89 = vld [vmem:[%s3 + $0x3c] sm:$0xf]
    %v90 = vld [vmem:[%s4] sm:$0x1]
    %v92 = vperm.slane %v90, 0
    %v110 = vunpack.c.l.b16 %v74
    %v111 = vunpack.c.l.b16 %v75
    %v112 = vunpack.c.l.b16 %v76
    %v113 = vunpack.c.l.b16 %v77
    %v114 = vunpack.c.l.b16 %v78
    %v115 = vunpack.c.l.b16 %v79
    %v116 = vunpack.c.l.b16 %v80
    %v117 = vunpack.c.l.b16 %v81
    %v118 = vunpack.c.l.b16 %v82
    %v119 = vunpack.c.l.b16 %v83
    %v120 = vunpack.c.l.b16 %v84
    %v121 = vunpack.c.l.b16 %v85
    %v122 = vunpack.c.l.b16 %v86
    %v123 = vunpack.c.l.b16 %v87
    %v124 = vunpack.c.l.b16 %v88
    %v125 = vunpack.c.l.b16 %v89
    %v126 = vpack.c.b16 %v111, %v110
    %v127 = vpack.c.b16 %v113, %v112
    %v128 = vpack.c.b16 %v115, %v114
    %v129 = vpack.c.b16 %v117, %v116
    %v130 = vpack.c.b16 %v119, %v118
    %v131 = vpack.c.b16 %v121, %v120
    %v132 = vpack.c.b16 %v123, %v122
    %v133 = vpack.c.b16 %v125, %v124
    %v135 = vsel %vm47, %v73, 0
    %v138 = vsel %vm47, %v126, 0
    %v141 = vsel %vm47, %v127, 0
    %v144 = vsel %vm47, %v128, 0
    %v147 = vsel %vm47, %v129, 0
    %v150 = vsel %vm47, %v130, 0
    %v153 = vsel %vm47, %v131, 0
    %v156 = vsel %vm47, %v132, 0
    %v159 = vsel %vm47, %v133, 0
    %161 = vmatpush.bf16.xpose.msra.mxu0 %v159
    %162 = vmatpush.bf16.xpose.msra.mxu0 %v156
    %163 = vmatpush.bf16.xpose.msra.mxu0 %v153
    %164 = vmatpush.bf16.xpose.msra.mxu0 %v150
    %165 = vmatpush.bf16.xpose.msra.mxu0 %v147
    %166 = vmatpush.bf16.xpose.msra.mxu0 %v144
    %167 = vmatpush.bf16.xpose.msra.mxu0 %v141
    %168 = vmatpush.bf16.xpose.msra.mxu0 %v138
    %169 = vmatmul.bf16.gmra.mxu0 %v135
    %v170 = vpop.f32.mrf.mxu0
    %v171 = vadd.f32 %v92, %v170
    %v172 = vpop.f32.mrf.mxu0
    %v173 = vadd.f32 %v92, %v172
    %174 = vdwg.mxu0
    %175 = vst [vmem:[#allocation2] sm:$0xff] %v171
    %176 = vst [vmem:[#allocation2 + $0x8] sm:$0xff] %v173
    // Predicated region
    $region22: #{tpu_custom_call.1} parent=1 // pred_check
      _
    $region23: #{tpu_custom_call.1} parent=1 // pred_check_branch
      %178 = sbr.rel (0) target = $region25
    $region24: #{tpu_custom_call.1} parent=1 // pred_region
      %180 = vsyncadd [#allocation3], 0
      %s181 = sshll.u32 [#allocation2], 4
      %s182 = int_to_ptr.vmem [resolvable:$true] %s181
      %s183 = sshll.u32 %s5, 4
      %s184 = int_to_ptr.hbm [resolvable:$true] %s183
      %189 = dma.vmem_to_hbm [thread:$0]  %s182, 256, %s184, [#allocation3], 128, 128, 8
    $region25: #{tpu_custom_call.1} parent=1 // pred_fallthru
      _
    // Predicated region
    $region26: #{tpu_custom_call.1} parent=1 // pred_check
      _
    $region27: #{tpu_custom_call.1} parent=1 // pred_check_branch
      %191 = sbr.rel (0) target = $region29
    $region28: #{tpu_custom_call.1} parent=1 // pred_region
      %193 = dma.done [#allocation3], 256
    $region29: #{tpu_custom_call.1} parent=1 // pred_fallthru
      _
    %194 = vsyncpa [#allocation3], 1

</llo_original>
